<compile_context>
chip_gen: v6e
topology: v6e:2x2x1
jax: 0.10.0
libtpu: 0.0.40
codegen_flags: <defaults>
</compile_context>

<pallas_src>
import functools

import jax
import jax.numpy as jnp
from jax.experimental import pallas as pl
from jax.experimental.pallas import tpu as pltpu


def _proto_kernel(x_ref, w1_ref, b1_ref, w2_ref, b2_ref, proto_ref, p2_ref,
                  out_ref, h_ref, *, seq_len):
    """One batch tile; x rows are already flattened to [block_b*seq_len, D]."""
    S = seq_len
    Bt = out_ref.shape[0]

    # ---- encoder layer 1: Linear -> ReLU on the flat [Bt*S, D] rows (MXU + VPU) ----
    h = jnp.dot(x_ref[...], w1_ref[...],
                preferred_element_type=jnp.float32) + b1_ref[...]
    h_ref[...] = jnp.maximum(h, 0.0)           # stage in VMEM scratch (lane-dense store)

    # ---- per-batch mean over seq BEFORE layer 2 (mean commutes with the affine) ----
    # Row index is b*S + s, so seq position s of every batch row in the tile is one
    # sublane-strided slice; S slices + (S-1) VPU adds replace the old block-diagonal
    # averaging matmul (which cost (block_b/D)x the layer-1 FLOPs and spilled vregs).
    acc = h_ref[pl.ds(0, Bt, stride=S), :]
    for s in range(1, S):                      # S is a small compile-time constant
        acc = acc + h_ref[pl.ds(s, Bt, stride=S), :]
    h_mean = acc * jnp.float32(1.0 / S)        # [Bt, Hp]

    # ---- encoder layer 2 on the per-batch means ----
    mean_emb = jnp.dot(h_mean, w2_ref[...],
                       preferred_element_type=jnp.float32) + b2_ref[...]    # [Bt, Hp]

    # ---- euclidean distances: ||m||^2 + ||p||^2 - 2 m.p^T (||p||^2 precomputed) ----
    protos = proto_ref[...]                                                 # [R, Hp]
    mp = jax.lax.dot_general(mean_emb, protos, (((1,), (1,)), ((), ())),
                             preferred_element_type=jnp.float32)            # [Bt, R]
    m2 = jnp.sum(mean_emb * mean_emb, axis=1, keepdims=True)                # [Bt, 1]
    d2 = jnp.maximum(m2 + p2_ref[...] - 2.0 * mp, 0.0)                      # clamp fp noise
    dists = jnp.sqrt(d2)                                                    # [Bt, R]

    # ---- softmax over -dists (denominator reciprocal rides the EUP slot) ----
    neg = -dists
    mmax = jnp.max(neg, axis=1, keepdims=True)
    e = jnp.exp(neg - mmax)
    inv = pl.reciprocal(jnp.sum(e, axis=1, keepdims=True), approx=True)
    sim = e * inv                                                           # [Bt, R]

    # ---- regime embedding = similarities @ prototypes (lane-dense [Bt, Hp] store) ----
    out_ref[...] = jnp.dot(sim, protos,
                           preferred_element_type=jnp.float32).astype(out_ref.dtype)


def _vmem_capacity_bytes():
    try:
        return int(pltpu.get_tpu_info().vmem_capacity_bytes)
    except Exception:
        return 64 * 1024 * 1024                # v7x per-core floor; safe on v5e/v6e too


def _pick_block_b(B, S, D, H_pad, x_itemsize, vmem_budget):
    """Largest 8-aligned batch tile fitting the VMEM budget, with >= 2 grid steps
    (both v7x TensorCores busy) whenever the batch is large enough."""
    if B <= 8:
        return B                               # one full-batch tile: always a legal block
    per_row = (2 * S * D * x_itemsize          # x tile, double-buffered
               + S * H_pad * 4                 # h scratch
               + 2 * H_pad * 4)                # output tile, double-buffered
    cap = max(8, (int(vmem_budget) // per_row // 8) * 8)
    half = max(8, (((B + 1) // 2) + 7) // 8 * 8)   # ~ceil(B/2), 8-aligned
    return min(cap, half)


def prototypical_network(x, w1, b1, w2, b2, prototypes, *,
                         block_b=None, use_bf16=False):
    """x: [B, S, D_in] -> regime embedding [B, H].

    w1: [D_in, H], b1: [H], w2: [H, H], b2: [H]  (PyTorch Linear weights pre-transposed),
    prototypes: [R, H].  use_bf16 casts the layer-1 operands (x, w1) once in the wrapper
    (halves x's HBM->VMEM bytes; elementwise math stays f32, so it is v5e-safe too).
    """
    B, S, D = x.shape
    H = w1.shape[1]
    R = prototypes.shape[0]
    H_pad = ((H + 127) // 128) * 128

    # ---- grid-invariant work hoisted out of the kernel --------------------------------
    # Zero-pad the hidden dim to a lane-dense multiple of 128: padded activations, means
    # and output columns are identically zero, so distances / softmax / output are exact,
    # and every store (h scratch + output writeback) is a full-lane vst.
    w1p = jnp.pad(w1, ((0, 0), (0, H_pad - H)))
    b1p = jnp.pad(b1.reshape(1, H), ((0, 0), (0, H_pad - H)))
    w2p = jnp.pad(w2, ((0, H_pad - H), (0, H_pad - H)))
    b2p = jnp.pad(b2.reshape(1, H), ((0, 0), (0, H_pad - H)))
    protop = jnp.pad(prototypes, ((0, 0), (0, H_pad - H)))
    p2 = jnp.sum(prototypes.astype(jnp.float32) ** 2, axis=1).reshape(1, R)  # ||p||^2

    x_flat = x.reshape(B * S, D)               # free metadata op in XLA
    if use_bf16:                               # cast once here, not per grid step
        x_flat = x_flat.astype(jnp.bfloat16)
        w1p = w1p.astype(jnp.bfloat16)

    # ---- batch tiling from a VMEM budget ----------------------------------------------
    vmem_cap = _vmem_capacity_bytes()
    budget = min(vmem_cap // 2, 48 * 1024 * 1024)
    if block_b is None:
        block_b = _pick_block_b(B, S, D, H_pad, x_flat.dtype.itemsize, budget)
    nblk = pl.cdiv(B, block_b)
    block_rows = block_b * S

    nbytes = lambda a: a.size * a.dtype.itemsize
    resident = (nbytes(w1p) + nbytes(b1p) + nbytes(w2p) + nbytes(b2p)
                + nbytes(protop) + nbytes(p2))
    vmem_need = (2 * block_rows * D * x_flat.dtype.itemsize
                 + block_rows * H_pad * 4
                 + 2 * block_b * H_pad * 4
                 + 2 * resident)
    vmem_limit = int(min(vmem_cap, max(vmem_need + (4 << 20), 16 << 20)))

    kernel = functools.partial(_proto_kernel, seq_len=S)

    flops = (2 * B * S * D * H_pad             # encoder layer 1
             + B * S * H_pad                   # seq-mean accumulation (VPU)
             + 2 * B * H_pad * H_pad           # encoder layer 2 (after the mean)
             + 4 * B * R * H_pad               # m.p^T and sim @ prototypes
             + 3 * B * H_pad + 8 * B * R)      # ||m||^2 + distance/softmax elementwise
    transcendentals = B * (2 * R + 1)          # exp + sqrt + reciprocal per row
    bytes_accessed = nbytes(x_flat) + B * H_pad * 4 + nblk * resident

    out = pl.pallas_call(
        kernel,
        out_shape=jax.ShapeDtypeStruct((B, H_pad), jnp.float32),
        grid=(nblk,),
        in_specs=[
            pl.BlockSpec((block_rows, D), lambda i: (i, 0)),   # x rows for this batch tile
            pl.BlockSpec((D, H_pad), lambda i: (0, 0)),        # w1 (resident)
            pl.BlockSpec((1, H_pad), lambda i: (0, 0)),        # b1
            pl.BlockSpec((H_pad, H_pad), lambda i: (0, 0)),    # w2
            pl.BlockSpec((1, H_pad), lambda i: (0, 0)),        # b2
            pl.BlockSpec((R, H_pad), lambda i: (0, 0)),        # prototypes
            pl.BlockSpec((1, R), lambda i: (0, 0)),            # ||prototypes||^2
        ],
        out_specs=pl.BlockSpec((block_b, H_pad), lambda i: (i, 0)),
        scratch_shapes=[pltpu.VMEM((block_rows, H_pad), jnp.float32)],
        compiler_params=pltpu.CompilerParams(
            dimension_semantics=("parallel",),                 # batch tiles -> both TCs on v7x
            vmem_limit_bytes=vmem_limit),
        cost_estimate=pl.CostEstimate(
            flops=int(flops),
            transcendentals=int(transcendentals),
            bytes_accessed=int(bytes_accessed)),
    )(x_flat, w1p, b1p, w2p, b2p, protop, p2)

    return out[:, :H]                          # drop the zero lane padding


def _reference(x, w1, b1, w2, b2, prototypes):
    """Faithful re-implementation of the PyTorch forward (for checking)."""
    B, S, D = x.shape
    h = jnp.maximum(x.reshape(B * S, D) @ w1 + b1, 0.0)
    enc = (h @ w2 + b2).reshape(B, S, -1)
    mean_emb = enc.mean(axis=1)
    diff = mean_emb[:, None, :] - prototypes[None, :, :]
    dists = jnp.sqrt(jnp.sum(diff * diff, axis=-1))
    sim = jax.nn.softmax(-dists, axis=1)
    return sim @ prototypes


if __name__ == "__main__":
    # Small shapes consistent with the module's forward: [batch, seq, input_dim].
    B, S, D_in = 2, 8, 32
    H, R = 32, 3                     # hidden_dim, num_regimes

    key = jax.random.PRNGKey(0)
    kx, k1, k2, k3, k4, kp = jax.random.split(key, 6)

    x = jax.random.normal(kx, (B, S, D_in), dtype=jnp.float32)

    # Deterministic synthetic parameters (shapes match nn.Linear / nn.Parameter).
    w1 = jax.random.normal(k1, (D_in, H), dtype=jnp.float32) * 0.1   # Linear(D_in,H).weight.T
    b1 = jax.random.normal(k2, (H,), dtype=jnp.float32) * 0.1        # Linear(D_in,H).bias
    w2 = jax.random.normal(k3, (H, H), dtype=jnp.float32) * 0.1      # Linear(H,H).weight.T
    b2 = jax.random.normal(k4, (H,), dtype=jnp.float32) * 0.1        # Linear(H,H).bias
    prototypes = jax.random.normal(kp, (R, H), dtype=jnp.float32)    # nn.Parameter(randn(R,H))

    out = prototypical_network(x, w1, b1, w2, b2, prototypes)
    out = jax.block_until_ready(out)

    ref = _reference(x, w1, b1, w2, b2, prototypes)
    assert out.shape == (B, H)
    # Tolerance covers the EUP approximate-reciprocal softmax normalization and the
    # algebraically-equivalent (but fp-reordered) mean-before-Linear / expanded-cdist math.
    assert jnp.allclose(out, ref, atol=2e-3, rtol=2e-3), "mismatch vs reference"

    print("KERNEL_OK")
</pallas_src>

<mosaic_0001>
module attributes {stable_mosaic.version = 11 : i64} {
  func.func @_proto_kernel(%arg0: i32, %arg1: memref<16x32xf32, #tpu.memory_space<vmem>>, %arg2: memref<32x128xf32, #tpu.memory_space<vmem>>, %arg3: memref<1x128xf32, #tpu.memory_space<vmem>>, %arg4: memref<128x128xf32, #tpu.memory_space<vmem>>, %arg5: memref<1x128xf32, #tpu.memory_space<vmem>>, %arg6: memref<3x128xf32, #tpu.memory_space<vmem>>, %arg7: memref<1x3xf32, #tpu.memory_space<vmem>>, %arg8: memref<2x128xf32, #tpu.memory_space<vmem>>, %arg9: memref<16x128xf32, #tpu.memory_space<vmem>>) attributes {dimension_semantics = [#tpu.dimension_semantics<parallel>], iteration_bounds = array<i64: 1>, scalar_prefetch = 0 : i64, scratch_operands = 1 : i64, tpu.core_type = #tpu.core_type<tc>, window_params = [{transform_indices = @transform_0, window_bounds = array<i64: 16, 32>}, {pipeline_mode = #tpu.pipeline_mode<synchronous>, transform_indices = @transform_1, window_bounds = array<i64: 32, 128>}, {pipeline_mode = #tpu.pipeline_mode<synchronous>, transform_indices = @transform_2, window_bounds = array<i64: 1, 128>}, {pipeline_mode = #tpu.pipeline_mode<synchronous>, transform_indices = @transform_3, window_bounds = array<i64: 128, 128>}, {pipeline_mode = #tpu.pipeline_mode<synchronous>, transform_indices = @transform_4, window_bounds = array<i64: 1, 128>}, {pipeline_mode = #tpu.pipeline_mode<synchronous>, transform_indices = @transform_5, window_bounds = array<i64: 3, 128>}, {pipeline_mode = #tpu.pipeline_mode<synchronous>, transform_indices = @transform_6, window_bounds = array<i64: 1, 3>}, {transform_indices = @transform_7, window_bounds = array<i64: 2, 128>}]} {
    %c0 = arith.constant 0 : index
    %c0_0 = arith.constant 0 : index
    %0 = vector.load %arg1[%c0, %c0_0] : memref<16x32xf32, #tpu.memory_space<vmem>>, vector<16x32xf32>
    %c0_1 = arith.constant 0 : index
    %c0_2 = arith.constant 0 : index
    %1 = vector.load %arg2[%c0_1, %c0_2] : memref<32x128xf32, #tpu.memory_space<vmem>>, vector<32x128xf32>
    %cst = arith.constant dense<0.000000e+00> : vector<16x128xf32>
    %2 = tpu.matmul %0, %1, %cst {dimension_numbers = #tpu.dot_dimension_numbers<[1], [0], [0], [1], [0, 0, 1, 1], [], []>} : vector<16x32xf32>, vector<32x128xf32>, vector<16x128xf32> -> vector<16x128xf32>
    %c0_3 = arith.constant 0 : index
    %c0_4 = arith.constant 0 : index
    %3 = vector.load %arg3[%c0_3, %c0_4] : memref<1x128xf32, #tpu.memory_space<vmem>>, vector<1x128xf32>
    %4 = vector.broadcast %3 : vector<1x128xf32> to vector<16x128xf32>
    %5 = arith.addf %2, %4 : vector<16x128xf32>
    %cst_5 = arith.constant 0.000000e+00 : f32
    %6 = vector.broadcast %cst_5 : f32 to vector<16x128xf32>
    %7 = arith.maximumf %5, %6 : vector<16x128xf32>
    %c0_6 = arith.constant 0 : index
    %c0_7 = arith.constant 0 : index
    %8 = vector.load %arg9[%c0_6, %c0_7] : memref<16x128xf32, #tpu.memory_space<vmem>>, vector<16x128xf32>
    tpu.vector_store %arg9[%c0_6, %c0_7], %7 {strides = array<i32>} : memref<16x128xf32, #tpu.memory_space<vmem>>, vector<16x128xf32>,
    %c0_8 = arith.constant 0 : index
    %c0_9 = arith.constant 0 : index
    %9 = tpu.strided_load %arg9[%c0_8, %c0_9] {strides = array<i32: 8, 1>} : memref<16x128xf32, #tpu.memory_space<vmem>>, vector<2x128xf32>
    %c1 = arith.constant 1 : index
    %c0_10 = arith.constant 0 : index
    %10 = tpu.strided_load %arg9[%c1, %c0_10] {strides = array<i32: 8, 1>} : memref<16x128xf32, #tpu.memory_space<vmem>>, vector<2x128xf32>
    %11 = arith.addf %9, %10 : vector<2x128xf32>
    %c2 = arith.constant 2 : index
    %c0_11 = arith.constant 0 : index
    %12 = tpu.strided_load %arg9[%c2, %c0_11] {strides = array<i32: 8, 1>} : memref<16x128xf32, #tpu.memory_space<vmem>>, vector<2x128xf32>
    %13 = arith.addf %11, %12 : vector<2x128xf32>
    %c3 = arith.constant 3 : index
    %c0_12 = arith.constant 0 : index
    %14 = tpu.strided_load %arg9[%c3, %c0_12] {strides = array<i32: 8, 1>} : memref<16x128xf32, #tpu.memory_space<vmem>>, vector<2x128xf32>
    %15 = arith.addf %13, %14 : vector<2x128xf32>
    %c4 = arith.constant 4 : index
    %c0_13 = arith.constant 0 : index
    %16 = tpu.strided_load %arg9[%c4, %c0_13] {strides = array<i32: 8, 1>} : memref<16x128xf32, #tpu.memory_space<vmem>>, vector<2x128xf32>
    %17 = arith.addf %15, %16 : vector<2x128xf32>
    %c5 = arith.constant 5 : index
    %c0_14 = arith.constant 0 : index
    %18 = tpu.strided_load %arg9[%c5, %c0_14] {strides = array<i32: 8, 1>} : memref<16x128xf32, #tpu.memory_space<vmem>>, vector<2x128xf32>
    %19 = arith.addf %17, %18 : vector<2x128xf32>
    %c6 = arith.constant 6 : index
    %c0_15 = arith.constant 0 : index
    %20 = tpu.strided_load %arg9[%c6, %c0_15] {strides = array<i32: 8, 1>} : memref<16x128xf32, #tpu.memory_space<vmem>>, vector<2x128xf32>
    %21 = arith.addf %19, %20 : vector<2x128xf32>
    %c7 = arith.constant 7 : index
    %c0_16 = arith.constant 0 : index
    %22 = tpu.strided_load %arg9[%c7, %c0_16] {strides = array<i32: 8, 1>} : memref<16x128xf32, #tpu.memory_space<vmem>>, vector<2x128xf32>
    %23 = arith.addf %21, %22 : vector<2x128xf32>
    %cst_17 = arith.constant 1.250000e-01 : f32
    %24 = vector.broadcast %cst_17 : f32 to vector<2x128xf32>
    %25 = arith.mulf %23, %24 : vector<2x128xf32>
    %c0_18 = arith.constant 0 : index
    %c0_19 = arith.constant 0 : index
    %26 = vector.load %arg4[%c0_18, %c0_19] : memref<128x128xf32, #tpu.memory_space<vmem>>, vector<128x128xf32>
    %cst_20 = arith.constant dense<0.000000e+00> : vector<2x128xf32>
    %27 = tpu.matmul %25, %26, %cst_20 {dimension_numbers = #tpu.dot_dimension_numbers<[1], [0], [0], [1], [0, 0, 1, 1], [], []>} : vector<2x128xf32>, vector<128x128xf32>, vector<2x128xf32> -> vector<2x128xf32>
    %c0_21 = arith.constant 0 : index
    %c0_22 = arith.constant 0 : index
    %28 = vector.load %arg5[%c0_21, %c0_22] : memref<1x128xf32, #tpu.memory_space<vmem>>, vector<1x128xf32>
    %29 = vector.broadcast %28 : vector<1x128xf32> to vector<2x128xf32>
    %30 = arith.addf %27, %29 : vector<2x128xf32>
    %c0_23 = arith.constant 0 : index
    %c0_24 = arith.constant 0 : index
    %31 = vector.load %arg6[%c0_23, %c0_24] : memref<3x128xf32, #tpu.memory_space<vmem>>, vector<3x128xf32>
    %cst_25 = arith.constant dense<0.000000e+00> : vector<2x3xf32>
    %32 = tpu.matmul %30, %31, %cst_25 {dimension_numbers = #tpu.dot_dimension_numbers<[1], [1], [0], [0], [0, 0, 1, 0], [], []>} : vector<2x128xf32>, vector<3x128xf32>, vector<2x3xf32> -> vector<2x3xf32>
    %33 = arith.mulf %30, %30 : vector<2x128xf32>
    %cst_26 = arith.constant dense<0.000000e+00> : vector<2xf32>
    %34 = vector.multi_reduction <add>, %33, %cst_26 [1] : vector<2x128xf32> to vector<2xf32>
    %35 = vector.shape_cast %34 : vector<2xf32> to vector<2x1xf32>
    %c0_27 = arith.constant 0 : index
    %c0_28 = arith.constant 0 : index
    %36 = vector.load %arg7[%c0_27, %c0_28] : memref<1x3xf32, #tpu.memory_space<vmem>>, vector<1x3xf32>
    %37 = vector.broadcast %35 : vector<2x1xf32> to vector<2x3xf32>
    %38 = vector.broadcast %36 : vector<1x3xf32> to vector<2x3xf32>
    %39 = arith.addf %37, %38 : vector<2x3xf32>
    %cst_29 = arith.constant 2.000000e+00 : f32
    %40 = vector.broadcast %cst_29 : f32 to vector<2x3xf32>
    %41 = arith.mulf %40, %32 : vector<2x3xf32>
    %42 = arith.subf %39, %41 : vector<2x3xf32>
    %cst_30 = arith.constant 0.000000e+00 : f32
    %43 = vector.broadcast %cst_30 : f32 to vector<2x3xf32>
    %44 = arith.maximumf %42, %43 : vector<2x3xf32>
    %45 = math.sqrt %44 : vector<2x3xf32>
    %cst_31 = arith.constant 0.000000e+00 : f32
    %46 = vector.broadcast %cst_31 : f32 to vector<2x3xf32>
    %47 = arith.subf %46, %45 : vector<2x3xf32>
    %cst_32 = arith.constant dense<0xFF800000> : vector<2xf32>
    %48 = vector.multi_reduction <maximumf>, %47, %cst_32 [1] : vector<2x3xf32> to vector<2xf32>
    %49 = vector.shape_cast %48 : vector<2xf32> to vector<2x1xf32>
    %50 = vector.broadcast %49 : vector<2x1xf32> to vector<2x3xf32>
    %51 = arith.subf %47, %50 : vector<2x3xf32>
    %52 = math.exp %51 : vector<2x3xf32>
    %cst_33 = arith.constant dense<0.000000e+00> : vector<2xf32>
    %53 = vector.multi_reduction <add>, %52, %cst_33 [1] : vector<2x3xf32> to vector<2xf32>
    %54 = vector.shape_cast %53 : vector<2xf32> to vector<2x1xf32>
    %55 = tpu.reciprocal %54 {approx = true} : vector<2x1xf32> -> vector<2x1xf32>
    %56 = vector.broadcast %55 : vector<2x1xf32> to vector<2x3xf32>
    %57 = arith.mulf %52, %56 : vector<2x3xf32>
    %cst_34 = arith.constant dense<0.000000e+00> : vector<2x128xf32>
    %58 = tpu.matmul %57, %31, %cst_34 {dimension_numbers = #tpu.dot_dimension_numbers<[1], [0], [0], [1], [0, 0, 1, 1], [], []>} : vector<2x3xf32>, vector<3x128xf32>, vector<2x128xf32> -> vector<2x128xf32>
    %c0_35 = arith.constant 0 : index
    %c0_36 = arith.constant 0 : index
    %59 = vector.load %arg8[%c0_35, %c0_36] : memref<2x128xf32, #tpu.memory_space<vmem>>, vector<2x128xf32>
    tpu.vector_store %arg8[%c0_35, %c0_36], %58 {strides = array<i32>} : memref<2x128xf32, #tpu.memory_space<vmem>>, vector<2x128xf32>,
    return
  }
  func.func @transform_0(%arg0: i32) -> (i32, i32) {
    %c0_i32 = arith.constant 0 : i32
    %c0_i32_0 = arith.constant 0 : i32
    return %arg0, %c0_i32 : i32, i32
  }
  func.func @transform_1(%arg0: i32) -> (i32, i32) {
    %c0_i32 = arith.constant 0 : i32
    %c0_i32_0 = arith.constant 0 : i32
    %c0_i32_1 = arith.constant 0 : i32
    return %c0_i32, %c0_i32_0 : i32, i32
  }
  func.func @transform_2(%arg0: i32) -> (i32, i32) {
    %c0_i32 = arith.constant 0 : i32
    %c0_i32_0 = arith.constant 0 : i32
    %c0_i32_1 = arith.constant 0 : i32
    return %c0_i32, %c0_i32_0 : i32, i32
  }
  func.func @transform_3(%arg0: i32) -> (i32, i32) {
    %c0_i32 = arith.constant 0 : i32
    %c0_i32_0 = arith.constant 0 : i32
    %c0_i32_1 = arith.constant 0 : i32
    return %c0_i32, %c0_i32_0 : i32, i32
  }
  func.func @transform_4(%arg0: i32) -> (i32, i32) {
    %c0_i32 = arith.constant 0 : i32
    %c0_i32_0 = arith.constant 0 : i32
    %c0_i32_1 = arith.constant 0 : i32
    return %c0_i32, %c0_i32_0 : i32, i32
  }
  func.func @transform_5(%arg0: i32) -> (i32, i32) {
    %c0_i32 = arith.constant 0 : i32
    %c0_i32_0 = arith.constant 0 : i32
    %c0_i32_1 = arith.constant 0 : i32
    return %c0_i32, %c0_i32_0 : i32, i32
  }
  func.func @transform_6(%arg0: i32) -> (i32, i32) {
    %c0_i32 = arith.constant 0 : i32
    %c0_i32_0 = arith.constant 0 : i32
    %c0_i32_1 = arith.constant 0 : i32
    return %c0_i32, %c0_i32_0 : i32, i32
  }
  func.func @transform_7(%arg0: i32) -> (i32, i32) {
    %c0_i32 = arith.constant 0 : i32
    %c0_i32_0 = arith.constant 0 : i32
    return %arg0, %c0_i32 : i32, i32
  }
}

</mosaic_0001>

<llo_original>
// kernel: tpu_custom_call.1
$region0: #{tpu_custom_call.1}
  #allocation0 [shape = 'u32[]', space=smem, size = 0x4, offset = 0x4, fixed_abs, tag = 'smem constant byte address 0x4 - core index']
  #allocation1 [shape = 'u32[144,128]{1,0:T(1,128)}', space=vmem, size = 0x12000, scoped, tag = 'internal scratch']
  #allocation2 [shape = 'f32[16,128]{1,0:T(8,128)}', space=vmem, size = 0x2000, scoped, tag = 'scratch operand']
  %s0 = inlined_call_operand.hbm [shape: f32[16,32], index: 0, kind: input, shape index: {}]
  %s1 = inlined_call_operand.hbm [shape: f32[32,128], index: 1, kind: input, shape index: {}]
  %s2 = inlined_call_operand.vmem [shape: f32[1,128], index: 2, kind: input, shape index: {}]
  %s3 = inlined_call_operand.hbm [shape: f32[128,128], index: 3, kind: input, shape index: {}]
  %s4 = inlined_call_operand.vmem [shape: f32[1,128], index: 4, kind: input, shape index: {}]
  %s5 = inlined_call_operand.vmem [shape: f32[3,128], index: 5, kind: input, shape index: {}]
  %s6 = inlined_call_operand.vmem [shape: f32[1,3], index: 6, kind: input, shape index: {}]
  %s7 = inlined_call_operand.hbm [shape: f32[2,128], index: 7, kind: output, shape index: {}]
  %s8 = sld [smem:[#allocation0]]
  $region50: #{tpu_custom_call.1} parent=0
    _
  %s10 = ssub.s32 1, %s8
  %s11 = scalar_select 0, %s10, %s8
  $region1: #{tpu_custom_call.1} parent=0
    #allocation3 [shape = 'u8[8192]{0}', space=vmem, size = 0x2000, scoped, tag = 'input window, operand 0, single buffered']
    #allocation4 [shape = 's32[1]{0}', space=sflag, size = 0x4, scoped, tag = 'scoped memory for tpu_custom_call.1']
    #allocation5 [shape = 's32[1]{0}', space=sflag, size = 0x4, scoped, tag = 'scoped memory for tpu_custom_call.1']
    #allocation6 [shape = 'u8[16384]{0}', space=vmem, size = 0x4000, scoped, tag = 'input window, operand 1, single buffered']
    #allocation7 [shape = 's32[1]{0}', space=sflag, size = 0x4, scoped, tag = 'scoped memory for tpu_custom_call.1']
    #allocation8 [shape = 'u8[65536]{0}', space=vmem, size = 0x10000, scoped, tag = 'input window, operand 3, single buffered']
    #allocation9 [shape = 'u8[1024]{0}', space=vmem, size = 0x400, scoped, tag = 'output window, operand 0, single buffered']
    %12 = vsyncpa [#allocation4], 0
    %13 = vsyncpa [#allocation7], 0
    %14 = vsyncpa [#allocation5], 0
    // Predicated region
    $region2: #{tpu_custom_call.1} parent=1 // pred_check
      _
    $region3: #{tpu_custom_call.1} parent=1 // pred_check_branch
      %16 = sbr.rel (0) target = $region5
    $region4: #{tpu_custom_call.1} parent=1 // pred_region
      %s18 = ssub.s32 256, 256
      %19 = vsyncadd [#allocation4], %s18
      %s20 = sshll.u32 [#allocation3], 4
      %s21 = int_to_ptr.vmem [resolvable:$true] %s20
      %26 = dma.hbm_to_vmem [thread:$0]  %s0, 256, %s21, [#allocation4], 128, 128, 8
    $region5: #{tpu_custom_call.1} parent=1 // pred_fallthru
      _
    // Predicated region
    $region6: #{tpu_custom_call.1} parent=1 // pred_check
      _
    $region7: #{tpu_custom_call.1} parent=1 // pred_check_branch
      %28 = sbr.rel (0) target = $region9
    $region8: #{tpu_custom_call.1} parent=1 // pred_region
      %s30 = ssub.s32 512, 512
      %31 = vsyncadd [#allocation7], %s30
      %s32 = sshll.u32 [#allocation6], 4
      %s33 = int_to_ptr.vmem [resolvable:$true] %s32
      %38 = dma.hbm_to_vmem [thread:$0]  %s1, 512, %s33, [#allocation7], 128, 128, 8
    $region9: #{tpu_custom_call.1} parent=1 // pred_fallthru
      _
    // Predicated region
    $region10: #{tpu_custom_call.1} parent=1 // pred_check
      _
    $region11: #{tpu_custom_call.1} parent=1 // pred_check_branch
      %40 = sbr.rel (0) target = $region13
    $region12: #{tpu_custom_call.1} parent=1 // pred_region
      _
    $region13: #{tpu_custom_call.1} parent=1 // pred_fallthru
      _
    // Predicated region
    $region14: #{tpu_custom_call.1} parent=1 // pred_check
      _
    $region15: #{tpu_custom_call.1} parent=1 // pred_check_branch
      %42 = sbr.rel (0) target = $region17
    $region16: #{tpu_custom_call.1} parent=1 // pred_region
      %s44 = ssub.s32 2048, 2048
      %45 = vsyncadd [#allocation7], %s44
      %s46 = sshll.u32 [#allocation8], 4
      %s47 = int_to_ptr.vmem [resolvable:$true] %s46
      %52 = dma.hbm_to_vmem [thread:$0]  %s3, 2048, %s47, [#allocation7], 128, 128, 8
    $region17: #{tpu_custom_call.1} parent=1 // pred_fallthru
      _
    // Predicated region
    $region18: #{tpu_custom_call.1} parent=1 // pred_check
      _
    $region19: #{tpu_custom_call.1} parent=1 // pred_check_branch
      %54 = sbr.rel (0) target = $region21
    $region20: #{tpu_custom_call.1} parent=1 // pred_region
      _
    $region21: #{tpu_custom_call.1} parent=1 // pred_fallthru
      _
    // Predicated region
    $region22: #{tpu_custom_call.1} parent=1 // pred_check
      _
    $region23: #{tpu_custom_call.1} parent=1 // pred_check_branch
      %56 = sbr.rel (0) target = $region25
    $region24: #{tpu_custom_call.1} parent=1 // pred_region
      _
    $region25: #{tpu_custom_call.1} parent=1 // pred_fallthru
      _
    // Predicated region
    $region26: #{tpu_custom_call.1} parent=1 // pred_check
      _
    $region27: #{tpu_custom_call.1} parent=1 // pred_check_branch
      %58 = sbr.rel (0) target = $region29
    $region28: #{tpu_custom_call.1} parent=1 // pred_region
      _
    $region29: #{tpu_custom_call.1} parent=1 // pred_fallthru
      _
    // Predicated region
    $region30: #{tpu_custom_call.1} parent=1 // pred_check
      _
    $region31: #{tpu_custom_call.1} parent=1 // pred_check_branch
      %60 = sbr.rel (0) target = $region33
    $region32: #{tpu_custom_call.1} parent=1 // pred_region
      %61 = dma.done [#allocation4], 256
    $region33: #{tpu_custom_call.1} parent=1 // pred_fallthru
      _
    // Predicated region
    $region34: #{tpu_custom_call.1} parent=1 // pred_check
      _
    $region35: #{tpu_custom_call.1} parent=1 // pred_check_branch
      %63 = sbr.rel (0) target = $region37
    $region36: #{tpu_custom_call.1} parent=1 // pred_region
      %64 = dma.done [#allocation7], 512
    $region37: #{tpu_custom_call.1} parent=1 // pred_fallthru
      _
    // Predicated region
    $region38: #{tpu_custom_call.1} parent=1 // pred_check
      _
    $region39: #{tpu_custom_call.1} parent=1 // pred_check_branch
      %66 = sbr.rel (0) target = $region41
    $region40: #{tpu_custom_call.1} parent=1 // pred_region
      %67 = dma.done [#allocation7], 2048
    $region41: #{tpu_custom_call.1} parent=1 // pred_fallthru
      _
    %v68 = vld [vmem:[#allocation3] sm:$0xff]
    %v69 = vld [vmem:[#allocation3 + $0x8] sm:$0xff]
    %v70 = vld [vmem:[#allocation6] sm:$0xff]
    %v71 = vld [vmem:[#allocation6 + $0x8] sm:$0xff]
    %v72 = vld [vmem:[#allocation6 + $0x10] sm:$0xff]
    %v73 = vld [vmem:[#allocation6 + $0x18] sm:$0xff]
    %v74 = vld [vmem:[%s2] sm:$0x1]
    %v76 = vlaneseq
    %v77 = vshrl.u32 %v76, 7
    %v78 = vsub.s32 0, %v77
    %v79 = vrot.slane %v74, %v78
    %vm81 = vcmask 261120
    %v83 = vsel %vm81, %v68, 0
    %v86 = vsel %vm81, %v69, 0
    %88 = vmatprep.subr.mxu0 0.0
    %89 = vmatpush1.msra.mxu0 0.0
    %90 = vmatprep.subr.mxu0 0.0
    %91 = vmatpush1.msra.mxu0 0.0
    %92 = vmatprep.subr.mxu0 0.0
    %93 = vmatpush1.msra.mxu0 0.0
    %94 = vmatprep.subr.mxu0 0.0
    %95 = vmatpush1.msra.mxu0 0.0
    %96 = vmatprep.subr.mxu0 0.0
    %97 = vmatpush1.msra.mxu0 0.0
    %98 = vmatprep.subr.mxu0 0.0
    %99 = vmatpush1.msra.mxu0 0.0
    %100 = vmatprep.subr.mxu0 0.0
    %101 = vmatpush1.msra.mxu0 0.0
    %102 = vmatprep.subr.mxu0 0.0
    %103 = vmatpush1.msra.mxu0 0.0
    %104 = vmatprep.subr.mxu0 0.0
    %105 = vmatpush1.msra.mxu0 0.0
    %106 = vmatprep.subr.mxu0 0.0
    %107 = vmatpush1.msra.mxu0 0.0
    %108 = vmatprep.subr.mxu0 0.0
    %109 = vmatpush1.msra.mxu0 0.0
    %110 = vmatprep.subr.mxu0 0.0
    %111 = vmatpush1.msra.mxu0 0.0
    %112 = vmatprep.subr.mxu0 0.0
    %113 = vmatpush1.msra.mxu0 %v73
    %114 = vmatprep.subr.mxu0 0.0
    %115 = vmatpush1.msra.mxu0 %v72
    %116 = vmatprep.subr.mxu0 0.0
    %117 = vmatpush1.msra.mxu0 %v71
    %118 = vmatprep.subr.mxu0 0.0
    %119 = vmatpush1.msra.mxu0 %v70
    %120 = vmatprep.subr.mxu0 0.0
    %121 = vmatpush2.msra.mxu0 0.0
    %122 = vmatprep.subr.mxu0 0.0
    %123 = vmatpush2.msra.mxu0 0.0
    %124 = vmatprep.subr.mxu0 0.0
    %125 = vmatpush2.msra.mxu0 0.0
    %126 = vmatprep.subr.mxu0 0.0
    %127 = vmatpush2.msra.mxu0 0.0
    %128 = vmatprep.subr.mxu0 0.0
    %129 = vmatpush2.msra.mxu0 0.0
    %130 = vmatprep.subr.mxu0 0.0
    %131 = vmatpush2.msra.mxu0 0.0
    %132 = vmatprep.subr.mxu0 0.0
    %133 = vmatpush2.msra.mxu0 0.0
    %134 = vmatprep.subr.mxu0 0.0
    %135 = vmatpush2.msra.mxu0 0.0
    %136 = vmatprep.subr.mxu0 0.0
    %137 = vmatpush2.msra.mxu0 0.0
    %138 = vmatprep.subr.mxu0 0.0
    %139 = vmatpush2.msra.mxu0 0.0
    %140 = vmatprep.subr.mxu0 0.0
    %141 = vmatpush2.msra.mxu0 0.0
    %142 = vmatprep.subr.mxu0 0.0
    %143 = vmatpush2.msra.mxu0 0.0
    %144 = vmatprep.subr.mxu0 0.0
    %145 = vmatpush2.msra.mxu0 0.0
    %146 = vmatprep.subr.mxu0 0.0
    %147 = vmatpush2.msra.mxu0 0.0
    %148 = vmatprep.subr.mxu0 0.0
    %149 = vmatpush2.msra.mxu0 0.0
    %150 = vmatprep.subr.mxu0 0.0
    %151 = vmatpush2.msra.mxu0 0.0
    %152 = vmatprep.mubr.f32.mxu0 0.0
    %153 = vmatmul.mubr.f32.gmra.mxu0 %v83
    %v154 = vpop.f32.mrf.mxu0
    %v155 = vadd.f32 %v79, %v154
    %v156 = vpop.f32.mrf.mxu0
    %157 = vmatprep.mubr.f32.mxu0 0.0
    %158 = vmatmul.mubr.f32.gmra.mxu0 %v86
    %v159 = vpop.f32.mrf.mxu0
    %v160 = vadd.f32 %v79, %v159
    %v161 = vpop.f32.mrf.mxu0
    %162 = vdwg.mxu0
    %v163 = vmax.f32 %v155, 0.0
    %v164 = vmax.f32 %v160, 0.0
    %165 = vst [vmem:[#allocation2] sm:$0xff] %v163
    %166 = vst [vmem:[#allocation2 + $0x8] sm:$0xff] %v164
    %v167 = vld [vmem:[#allocation2] ss:$8 sm:$0x3]
    %s168 = scalar_lea.vmem [#allocation2], 1
    %v169 = vld [vmem:[%s168] ss:$8 sm:$0x3]
    %v170 = vadd.f32 %v167, %v169
    %s171 = scalar_lea.vmem [#allocation2], 2
    %v172 = vld [vmem:[%s171] ss:$8 sm:$0x3]
    %v173 = vadd.f32 %v170, %v172
    %s174 = scalar_lea.vmem [#allocation2], 3
    %v175 = vld [vmem:[%s174] ss:$8 sm:$0x3]
    %v176 = vadd.f32 %v173, %v175
    %s177 = scalar_lea.vmem [#allocation2], 4
    %v178 = vld [vmem:[%s177] ss:$8 sm:$0x3]
    %v179 = vadd.f32 %v176, %v178
    %s180 = scalar_lea.vmem [#allocation2], 5
    %v181 = vld [vmem:[%s180] ss:$8 sm:$0x3]
    %v182 = vadd.f32 %v179, %v181
    %s183 = scalar_lea.vmem [#allocation2], 6
    %v184 = vld [vmem:[%s183] ss:$8 sm:$0x3]
    %v185 = vadd.f32 %v182, %v184
    %s186 = scalar_lea.vmem [#allocation2], 7
    %v187 = vld [vmem:[%s186] ss:$8 sm:$0x3]
    %v188 = vadd.f32 %v185, %v187
    %v189 = vmul.f32 %v188, 0.125
    %v190 = vld [vmem:[#allocation8] sm:$0xff]
    %v191 = vld [vmem:[#allocation8 + $0x8] sm:$0xff]
    %v192 = vld [vmem:[#allocation8 + $0x10] sm:$0xff]
    %v193 = vld [vmem:[#allocation8 + $0x18] sm:$0xff]
    %v194 = vld [vmem:[#allocation8 + $0x20] sm:$0xff]
    %v195 = vld [vmem:[#allocation8 + $0x28] sm:$0xff]
    %v196 = vld [vmem:[#allocation8 + $0x30] sm:$0xff]
    %v197 = vld [vmem:[#allocation8 + $0x38] sm:$0xff]
    %v198 = vld [vmem:[#allocation8 + $0x40] sm:$0xff]
    %v199 = vld [vmem:[#allocation8 + $0x48] sm:$0xff]
    %v200 = vld [vmem:[#allocation8 + $0x50] sm:$0xff]
    %v201 = vld [vmem:[#allocation8 + $0x58] sm:$0xff]
    %v202 = vld [vmem:[#allocation8 + $0x60] sm:$0xff]
    %v203 = vld [vmem:[#allocation8 + $0x68] sm:$0xff]
    %v204 = vld [vmem:[#allocation8 + $0x70] sm:$0xff]
    %v205 = vld [vmem:[#allocation8 + $0x78] sm:$0xff]
    %v206 = vld [vmem:[%s4] sm:$0x1]
    %v208 = vlaneseq
    %v209 = vshrl.u32 %v208, 7
    %v210 = vsub.s32 0, %v209
    %v211 = vrot.slane %v206, %v210
    %213 = vmatprep.subr.mxu0 0.0
    %214 = vmatpush1.msra.mxu0 %v205
    %215 = vmatprep.subr.mxu0 0.0
    %216 = vmatpush1.msra.mxu0 %v204
    %217 = vmatprep.subr.mxu0 0.0
    %218 = vmatpush1.msra.mxu0 %v203
    %219 = vmatprep.subr.mxu0 0.0
    %220 = vmatpush1.msra.mxu0 %v202
    %221 = vmatprep.subr.mxu0 0.0
    %222 = vmatpush1.msra.mxu0 %v201
    %223 = vmatprep.subr.mxu0 0.0
    %224 = vmatpush1.msra.mxu0 %v200
    %225 = vmatprep.subr.mxu0 0.0
    %226 = vmatpush1.msra.mxu0 %v199
    %227 = vmatprep.subr.mxu0 0.0
    %228 = vmatpush1.msra.mxu0 %v198
    %229 = vmatprep.subr.mxu0 0.0
    %230 = vmatpush1.msra.mxu0 %v197
    %231 = vmatprep.subr.mxu0 0.0
    %232 = vmatpush1.msra.mxu0 %v196
    %233 = vmatprep.subr.mxu0 0.0
    %234 = vmatpush1.msra.mxu0 %v195
    %235 = vmatprep.subr.mxu0 0.0
    %236 = vmatpush1.msra.mxu0 %v194
    %237 = vmatprep.subr.mxu0 0.0
    %238 = vmatpush1.msra.mxu0 %v193
    %239 = vmatprep.subr.mxu0 0.0
    %240 = vmatpush1.msra.mxu0 %v192
    %241 = vmatprep.subr.mxu0 0.0
    %242 = vmatpush1.msra.mxu0 %v191
    %243 = vmatprep.subr.mxu0 0.0
    %244 = vmatpush1.msra.mxu0 %v190
    %245 = vmatprep.subr.mxu0 0.0
    %246 = vmatpush2.msra.mxu0 0.0
    %247 = vmatprep.subr.mxu0 0.0
    %248 = vmatpush2.msra.mxu0 0.0
    %249 = vmatprep.subr.mxu0 0.0
    %250 = vmatpush2.msra.mxu0 0.0
    %251 = vmatprep.subr.mxu0 0.0
    %252 = vmatpush2.msra.mxu0 0.0
    %253 = vmatprep.subr.mxu0 0.0
    %254 = vmatpush2.msra.mxu0 0.0
    %255 = vmatprep.subr.mxu0 0.0
    %256 = vmatpush2.msra.mxu0 0.0
    %257 = vmatprep.subr.mxu0 0.0
    %258 = vmatpush2.msra.mxu0 0.0
    %259 = vmatprep.subr.mxu0 0.0
    %260 = vmatpush2.msra.mxu0 0.0
    %261 = vmatprep.subr.mxu0 0.0
    %262 = vmatpush2.msra.mxu0 0.0
    %263 = vmatprep.subr.mxu0 0.0
    %264 = vmatpush2.msra.mxu0 0.0
    %265 = vmatprep.subr.mxu0 0.0
    %266 = vmatpush2.msra.mxu0 0.0
    %267 = vmatprep.subr.mxu0 0.0
    %268 = vmatpush2.msra.mxu0 0.0
    %269 = vmatprep.subr.mxu0 0.0
    %270 = vmatpush2.msra.mxu0 0.0
    %271 = vmatprep.subr.mxu0 0.0
    %272 = vmatpush2.msra.mxu0 0.0
    %273 = vmatprep.subr.mxu0 0.0
    %274 = vmatpush2.msra.mxu0 0.0
    %275 = vmatprep.subr.mxu0 0.0
    %276 = vmatpush2.msra.mxu0 0.0
    %277 = vmatprep.mubr.f32.mxu0 0.0
    %278 = vmatmul.mubr.f32.gmra.mxu0 %v189
    %v279 = vpop.f32.mrf.mxu0
    %v280 = vadd.f32 %v211, %v279
    %v281 = vpop.f32.mrf.mxu0
    %282 = vdwg.mxu0
    %v283 = vld [vmem:[%s5] sm:$0x7]
    %284 = vmatprep.subr.mxu0 0.0
    %285 = vmatpush1.xpose.msra.mxu0 0.0
    %286 = vmatprep.subr.mxu0 0.0
    %287 = vmatpush1.xpose.msra.mxu0 0.0
    %288 = vmatprep.subr.mxu0 0.0
    %289 = vmatpush1.xpose.msra.mxu0 0.0
    %290 = vmatprep.subr.mxu0 0.0
    %291 = vmatpush1.xpose.msra.mxu0 0.0
    %292 = vmatprep.subr.mxu0 0.0
    %293 = vmatpush1.xpose.msra.mxu0 0.0
    %294 = vmatprep.subr.mxu0 0.0
    %295 = vmatpush1.xpose.msra.mxu0 0.0
    %296 = vmatprep.subr.mxu0 0.0
    %297 = vmatpush1.xpose.msra.mxu0 0.0
    %298 = vmatprep.subr.mxu0 0.0
    %299 = vmatpush1.xpose.msra.mxu0 0.0
    %300 = vmatprep.subr.mxu0 0.0
    %301 = vmatpush1.xpose.msra.mxu0 0.0
    %302 = vmatprep.subr.mxu0 0.0
    %303 = vmatpush1.xpose.msra.mxu0 0.0
    %304 = vmatprep.subr.mxu0 0.0
    %305 = vmatpush1.xpose.msra.mxu0 0.0
    %306 = vmatprep.subr.mxu0 0.0
    %307 = vmatpush1.xpose.msra.mxu0 0.0
    %308 = vmatprep.subr.mxu0 0.0
    %309 = vmatpush1.xpose.msra.mxu0 0.0
    %310 = vmatprep.subr.mxu0 0.0
    %311 = vmatpush1.xpose.msra.mxu0 0.0
    %312 = vmatprep.subr.mxu0 0.0
    %313 = vmatpush1.xpose.msra.mxu0 0.0
    %314 = vmatprep.subr.mxu0 0.0
    %315 = vmatpush1.xpose.msra.mxu0 %v283
    %316 = vmatprep.subr.mxu0 0.0
    %317 = vmatpush2.xpose.msra.mxu0 0.0
    %318 = vmatprep.subr.mxu0 0.0
    %319 = vmatpush2.xpose.msra.mxu0 0.0
    %320 = vmatprep.subr.mxu0 0.0
    %321 = vmatpush2.xpose.msra.mxu0 0.0
    %322 = vmatprep.subr.mxu0 0.0
    %323 = vmatpush2.xpose.msra.mxu0 0.0
    %324 = vmatprep.subr.mxu0 0.0
    %325 = vmatpush2.xpose.msra.mxu0 0.0
    %326 = vmatprep.subr.mxu0 0.0
    %327 = vmatpush2.xpose.msra.mxu0 0.0
    %328 = vmatprep.subr.mxu0 0.0
    %329 = vmatpush2.xpose.msra.mxu0 0.0
    %330 = vmatprep.subr.mxu0 0.0
    %331 = vmatpush2.xpose.msra.mxu0 0.0
    %332 = vmatprep.subr.mxu0 0.0
    %333 = vmatpush2.xpose.msra.mxu0 0.0
    %334 = vmatprep.subr.mxu0 0.0
    %335 = vmatpush2.xpose.msra.mxu0 0.0
    %336 = vmatprep.subr.mxu0 0.0
    %337 = vmatpush2.xpose.msra.mxu0 0.0
    %338 = vmatprep.subr.mxu0 0.0
    %339 = vmatpush2.xpose.msra.mxu0 0.0
    %340 = vmatprep.subr.mxu0 0.0
    %341 = vmatpush2.xpose.msra.mxu0 0.0
    %342 = vmatprep.subr.mxu0 0.0
    %343 = vmatpush2.xpose.msra.mxu0 0.0
    %344 = vmatprep.subr.mxu0 0.0
    %345 = vmatpush2.xpose.msra.mxu0 0.0
    %346 = vmatprep.subr.mxu0 0.0
    %347 = vmatpush2.xpose.msra.mxu0 0.0
    %348 = vmatprep.mubr.f32.mxu0 0.0
    %349 = vmatmul.mubr.f32.gmra.mxu0 %v280
    %v350 = vpop.f32.mrf.mxu0
    %v351 = vadd.f32 0.0, %v350
    %v352 = vpop.f32.mrf.mxu0
    %353 = vdwg.mxu0
    %v354 = vmul.f32 %v280, %v280
    %vm355 = vcmask 1041408
    %v356 = vsel %vm355, %v354, 0.0
    %357 = vadd.xlane.f32.xlu0 %v356
    %v358 = vpop.xlane.xlu0 %357
    %v359 = vld [vmem:[%s6] sm:$0x1]
    %v361 = vlaneseq
    %v362 = vshrl.u32 %v361, 7
    %v363 = vsub.s32 0, %v362
    %v364 = vrot.slane %v359, %v363
    %v366 = vadd.f32 %v358, %v364
    %v367 = vmul.f32 %v351, 2.0
    %v368 = vsub.f32 %v366, %v367
    %v369 = vmax.f32 %v368, 0.0
    %v370 = vrsqrt.pop %v369
    %v371 = vmul.f32 %v369, %v370
    %vm372 = vcmp.eq.f32.partialorder %v369, inf
    %v373 = vsel %vm372, %v369, %v371
    %vm374 = vcmp.eq.f32.partialorder %v369, 0.0
    %v375 = vand.u32 %v369, 2147483648
    %v376 = vsel %vm374, %v375, %v373
    %v377 = vsub.f32 0.0, %v376
    %vm378 = vcmask 17408
    %v379 = vsel %vm378, %v377, -inf
    %380 = vmax.xlane.f32.xlu0 %v379
    %v381 = vpop.xlane.xlu0 %380
    %v382 = vsub.f32 %v377, %v381
    %v383 = vmul.f32 %v382, 1.442695
    %v384 = vpow.pop %v383
    %v385 = vsel %vm378, %v384, 0.0
    %386 = vadd.xlane.f32.xlu0 %v385
    %v387 = vpop.xlane.xlu0 %386
    %v388 = vrcp.pop %v387
    %v389 = vmul.f32 %v384, %v388
    %vm390 = vcmask 23552
    %v392 = vsel %vm390, %v389, 0
    %vm394 = vcmask 1042432
    %v396 = vsel %vm394, %v283, 0
    %398 = vmatprep.subr.mxu0 0.0
    %399 = vmatpush1.msra.mxu0 0.0
    %400 = vmatprep.subr.mxu0 0.0
    %401 = vmatpush1.msra.mxu0 0.0
    %402 = vmatprep.subr.mxu0 0.0
    %403 = vmatpush1.msra.mxu0 0.0
    %404 = vmatprep.subr.mxu0 0.0
    %405 = vmatpush1.msra.mxu0 0.0
    %406 = vmatprep.subr.mxu0 0.0
    %407 = vmatpush1.msra.mxu0 0.0
    %408 = vmatprep.subr.mxu0 0.0
    %409 = vmatpush1.msra.mxu0 0.0
    %410 = vmatprep.subr.mxu0 0.0
    %411 = vmatpush1.msra.mxu0 0.0
    %412 = vmatprep.subr.mxu0 0.0
    %413 = vmatpush1.msra.mxu0 0.0
    %414 = vmatprep.subr.mxu0 0.0
    %415 = vmatpush1.msra.mxu0 0.0
    %416 = vmatprep.subr.mxu0 0.0
    %417 = vmatpush1.msra.mxu0 0.0
    %418 = vmatprep.subr.mxu0 0.0
    %419 = vmatpush1.msra.mxu0 0.0
    %420 = vmatprep.subr.mxu0 0.0
    %421 = vmatpush1.msra.mxu0 0.0
    %422 = vmatprep.subr.mxu0 0.0
    %423 = vmatpush1.msra.mxu0 0.0
    %424 = vmatprep.subr.mxu0 0.0
    %425 = vmatpush1.msra.mxu0 0.0
    %426 = vmatprep.subr.mxu0 0.0
    %427 = vmatpush1.msra.mxu0 0.0
    %428 = vmatprep.subr.mxu0 0.0
    %429 = vmatpush1.msra.mxu0 %v396
    %430 = vmatprep.subr.mxu0 0.0
    %431 = vmatpush2.msra.mxu0 0.0
    %432 = vmatprep.subr.mxu0 0.0
    %433 = vmatpush2.msra.mxu0 0.0
    %434 = vmatprep.subr.mxu0 0.0
    %435 = vmatpush2.msra.mxu0 0.0
    %436 = vmatprep.subr.mxu0 0.0
    %437 = vmatpush2.msra.mxu0 0.0
    %438 = vmatprep.subr.mxu0 0.0
    %439 = vmatpush2.msra.mxu0 0.0
    %440 = vmatprep.subr.mxu0 0.0
    %441 = vmatpush2.msra.mxu0 0.0
    %442 = vmatprep.subr.mxu0 0.0
    %443 = vmatpush2.msra.mxu0 0.0
    %444 = vmatprep.subr.mxu0 0.0
    %445 = vmatpush2.msra.mxu0 0.0
    %446 = vmatprep.subr.mxu0 0.0
    %447 = vmatpush2.msra.mxu0 0.0
    %448 = vmatprep.subr.mxu0 0.0
    %449 = vmatpush2.msra.mxu0 0.0
    %450 = vmatprep.subr.mxu0 0.0
    %451 = vmatpush2.msra.mxu0 0.0
    %452 = vmatprep.subr.mxu0 0.0
    %453 = vmatpush2.msra.mxu0 0.0
    %454 = vmatprep.subr.mxu0 0.0
    %455 = vmatpush2.msra.mxu0 0.0
    %456 = vmatprep.subr.mxu0 0.0
    %457 = vmatpush2.msra.mxu0 0.0
    %458 = vmatprep.subr.mxu0 0.0
    %459 = vmatpush2.msra.mxu0 0.0
    %460 = vmatprep.subr.mxu0 0.0
    %461 = vmatpush2.msra.mxu0 0.0
    %462 = vmatprep.mubr.f32.mxu0 0.0
    %463 = vmatmul.mubr.f32.gmra.mxu0 %v392
    %v464 = vpop.f32.mrf.mxu0
    %v465 = vadd.f32 0.0, %v464
    %v466 = vpop.f32.mrf.mxu0
    %467 = vdwg.mxu0
    %468 = vst [vmem:[#allocation9] sm:$0x3] %v465
    // Predicated region
    $region42: #{tpu_custom_call.1} parent=1 // pred_check
      _
    $region43: #{tpu_custom_call.1} parent=1 // pred_check_branch
      %470 = sbr.rel (0) target = $region45
    $region44: #{tpu_custom_call.1} parent=1 // pred_region
      %s472 = ssub.s32 32, 32
      %473 = vsyncadd [#allocation5], %s472
      %s475 = sshll.u32 [#allocation9], 4
      %s476 = int_to_ptr.vmem [resolvable:$true] %s475
      %478 = dma.vmem_to_hbm [thread:$0]  %s476, 32, %s7, [#allocation5]
    $region45: #{tpu_custom_call.1} parent=1 // pred_fallthru
      _
    // Predicated region
    $region46: #{tpu_custom_call.1} parent=1 // pred_check
      _
    $region47: #{tpu_custom_call.1} parent=1 // pred_check_branch
      %480 = sbr.rel (0) target = $region49
    $region48: #{tpu_custom_call.1} parent=1 // pred_region
      %481 = dma.done [#allocation5], 32
    $region49: #{tpu_custom_call.1} parent=1 // pred_fallthru
      _
    %482 = vsyncpa [#allocation4], 1
    %483 = vsyncpa [#allocation7], 1
    %484 = vsyncpa [#allocation5], 1

</llo_original>
